<compile_context>
chip_gen: v7x
topology: tpu7x:2x2x1
jax: 0.10.0
libtpu: 0.0.40
codegen_flags: <defaults>
</compile_context>

<pallas_src>
import jax
import jax.numpy as jnp
from jax import lax
from jax.experimental import pallas as pl
from jax.experimental.pallas import tpu as pltpu

HIDDEN = 300                      # logical hidden width (matches the PyTorch module)
HIDDEN_PAD = 384                  # 3 * 128 lanes
N_PAD_LANES = HIDDEN_PAD - HIDDEN # 84 padded hidden lanes (exact zeros in h)
LN_EPS = 1e-5
LANE = 128
SUBLANE = 8                       # f32 sublane tile
BF16_SUBLANE = 16                 # bf16 sublane tile


def _round_up(n, m):
    return (n + m - 1) // m * m


# ----------------------------------------------------------------------------- kernel
def policy_net_kernel(x_ref, w1_ref, w2_ref, w3_ref, p_ref, o_ref):
    # packed per-feature params (f32): rows are b1,g1,be1,b2,g2,be2,b3 (zero-padded)
    b1, g1, be1 = p_ref[0:1, :], p_ref[1:2, :], p_ref[2:3, :]
    b2, g2, be2 = p_ref[3:4, :], p_ref[4:5, :], p_ref[5:6, :]
    out_pad = o_ref.shape[-1]
    b3 = p_ref[6:7, :out_pad]

    inv_n = jnp.float32(1.0 / HIDDEN)
    n_extra = jnp.float32(N_PAD_LANES)

    def ln_relu(h, gamma, beta):
        # Padded hidden lanes of h are exact zeros (weight columns and biases are
        # zero-padded), so:
        #   mean over the 300 logical features  = sum_384(h) / 300
        #   sum_384(centered^2) = sum_300(centered^2) + 84 * mu^2     (exact)
        # -> no lane mask / iota needed; clamp at 0 against f32 cancellation.
        mu = jnp.sum(h, axis=-1, keepdims=True) * inv_n
        centered = h - mu
        var = (jnp.sum(centered * centered, axis=-1, keepdims=True)
               - n_extra * (mu * mu)) * inv_n
        var = jnp.maximum(var, 0.0)
        # gamma/beta are zero on padded lanes -> output stays exactly 0 there.
        y = centered * lax.rsqrt(var + LN_EPS) * gamma + beta
        return jnp.maximum(y, 0.0)

    x = x_ref[...]                                             # (TB, obs_pad) f32

    # ---- Linear(n_obs, 300) + LayerNorm(300) + ReLU  (bf16 MXU, f32 accumulate)
    h = jnp.dot(x.astype(jnp.bfloat16), w1_ref[...],
                preferred_element_type=jnp.float32) + b1
    h = ln_relu(h, g1, be1)

    # ---- Linear(300, 300) + LayerNorm(300) + ReLU ------------------------------
    h = jnp.dot(h.astype(jnp.bfloat16), w2_ref[...],
                preferred_element_type=jnp.float32) + b2
    h = ln_relu(h, g2, be2)

    # ---- Linear(300, n_actions) -------------------------------------------------
    o = jnp.dot(h.astype(jnp.bfloat16), w3_ref[...],
                preferred_element_type=jnp.float32) + b3
    o_ref[...] = o.astype(o_ref.dtype)


# ----------------------------------------------------------------------------- wrapper
def policy_net_forward(x, packed):
    """x: (B, n_observations) -> (B, n_actions), using padded/packed params."""
    w1, w2, w3, pvec = packed["w1"], packed["w2"], packed["w3"], packed["pvec"]
    n_obs, n_actions = packed["n_obs"], packed["n_actions"]

    B = x.shape[0]
    obs_pad = w1.shape[0]   # n_obs rounded up to 16 (no 128-lane x padding)
    out_pad = w3.shape[1]   # n_actions rounded up to 128 (lane-dense output store)

    # Batch tile: >= 4 grid steps for B > 8 so the "parallel" axis shards across
    # v7x's two TensorCores and x/out DMA pipelines behind the matmuls; capped at
    # 1024 rows/step to keep per-step overhead amortized on v5e/v6e.
    if B <= SUBLANE:
        tb = SUBLANE
    else:
        tb = min(1024, _round_up((B + 3) // 4, SUBLANE))
    b_pad = _round_up(B, tb)

    # Only sublane-pad the batch / obs dims when required (no 128-lane x copy).
    if (b_pad != B) or (obs_pad != n_obs) or (x.dtype != jnp.float32):
        x_p = jnp.zeros((b_pad, obs_pad), jnp.float32)
        x_p = x_p.at[:B, :n_obs].set(x.astype(jnp.float32))
    else:
        x_p = x

    grid = (b_pad // tb,)
    out = pl.pallas_call(
        policy_net_kernel,
        out_shape=jax.ShapeDtypeStruct((b_pad, out_pad), jnp.float32),
        grid_spec=pltpu.PrefetchScalarGridSpec(
            num_scalar_prefetch=0,
            grid=grid,
            in_specs=[
                pl.BlockSpec((tb, obs_pad), lambda i: (i, 0)),             # x tile
                pl.BlockSpec((obs_pad, HIDDEN_PAD), lambda i: (0, 0)),     # w1 (resident)
                pl.BlockSpec((HIDDEN_PAD, HIDDEN_PAD), lambda i: (0, 0)),  # w2 (resident)
                pl.BlockSpec((HIDDEN_PAD, out_pad), lambda i: (0, 0)),     # w3 (resident)
                pl.BlockSpec((8, HIDDEN_PAD), lambda i: (0, 0)),           # packed vectors
            ],
            out_specs=pl.BlockSpec((tb, out_pad), lambda i: (i, 0)),       # lane-dense out
        ),
        compiler_params=pltpu.CompilerParams(
            dimension_semantics=("parallel",)),
    )(x_p, w1, w2, w3, pvec)

    # Padded batch rows are all-zero inputs; LayerNorm on them stays finite only
    # because LN_EPS > 0 and var is clamped >= 0 in-kernel; they are sliced off here.
    return out[:B, :n_actions]


# ----------------------------------------------------------------------------- params
def init_policy_net_params(key, n_observations, n_actions):
    """Logical (unpadded) f32 params mimicking PyTorch defaults; weights (in, out)."""
    ks = jax.random.split(key, 6)

    def linear(kw, kb, fan_in, fan_out):
        bound = 1.0 / jnp.sqrt(jnp.float32(fan_in))
        w = jax.random.uniform(kw, (fan_in, fan_out), jnp.float32, -bound, bound)
        b = jax.random.uniform(kb, (fan_out,), jnp.float32, -bound, bound)
        return w, b

    w1, b1 = linear(ks[0], ks[1], n_observations, HIDDEN)
    w2, b2 = linear(ks[2], ks[3], HIDDEN, HIDDEN)
    w3, b3 = linear(ks[4], ks[5], HIDDEN, n_actions)
    return dict(
        w1=w1, b1=b1, g1=jnp.ones((HIDDEN,), jnp.float32), be1=jnp.zeros((HIDDEN,), jnp.float32),
        w2=w2, b2=b2, g2=jnp.ones((HIDDEN,), jnp.float32), be2=jnp.zeros((HIDDEN,), jnp.float32),
        w3=w3, b3=b3, n_obs=n_observations, n_actions=n_actions)


def pack_policy_net_params(p):
    """Zero-pad, cast weights to bf16, bundle all small vectors into one (8,384) f32."""
    n_obs, n_act = p["n_obs"], p["n_actions"]
    assert n_act <= HIDDEN_PAD, "pvec row 6 holds at most HIDDEN_PAD action biases"
    obs_pad = _round_up(max(n_obs, 1), BF16_SUBLANE)   # K of first matmul (sublane only)
    out_pad = _round_up(max(n_act, 1), LANE)           # lane-dense output store

    w1 = (jnp.zeros((obs_pad, HIDDEN_PAD), jnp.float32)
          .at[:n_obs, :HIDDEN].set(p["w1"]).astype(jnp.bfloat16))
    w2 = (jnp.zeros((HIDDEN_PAD, HIDDEN_PAD), jnp.float32)
          .at[:HIDDEN, :HIDDEN].set(p["w2"]).astype(jnp.bfloat16))
    w3 = (jnp.zeros((HIDDEN_PAD, out_pad), jnp.float32)
          .at[:HIDDEN, :n_act].set(p["w3"]).astype(jnp.bfloat16))

    pvec = jnp.zeros((8, HIDDEN_PAD), jnp.float32)
    pvec = pvec.at[0, :HIDDEN].set(p["b1"])
    pvec = pvec.at[1, :HIDDEN].set(p["g1"])
    pvec = pvec.at[2, :HIDDEN].set(p["be1"])
    pvec = pvec.at[3, :HIDDEN].set(p["b2"])
    pvec = pvec.at[4, :HIDDEN].set(p["g2"])
    pvec = pvec.at[5, :HIDDEN].set(p["be2"])
    pvec = pvec.at[6, :n_act].set(p["b3"])

    # TODO(synk): for per-env-step inference at B<=8, adopt cross-call weight
    # residency (P10: start the weight DMA in a prior pallas_call / keep weights
    # VMEM-resident) so the hot call only moves x and out.
    return dict(w1=w1, w2=w2, w3=w3, pvec=pvec, n_obs=n_obs, n_actions=n_act)


# ----------------------------------------------------------------------------- reference
def _reference_forward(x, p, bf16_weights=False):
    cast = (lambda a: a.astype(jnp.bfloat16)) if bf16_weights else (lambda a: a)

    def dense(a, w, b):
        return jnp.dot(cast(a), cast(w), preferred_element_type=jnp.float32) + b

    def ln(h, g, b):
        mu = jnp.mean(h, axis=-1, keepdims=True)
        var = jnp.mean((h - mu) ** 2, axis=-1, keepdims=True)
        return (h - mu) / jnp.sqrt(var + LN_EPS) * g + b

    h = jnp.maximum(ln(dense(x, p["w1"], p["b1"]), p["g1"], p["be1"]), 0.0)
    h = jnp.maximum(ln(dense(h, p["w2"], p["b2"]), p["g2"], p["be2"]), 0.0)
    return dense(h, p["w3"], p["b3"])


if __name__ == "__main__":
    key = jax.random.PRNGKey(0)
    k_param, k_x1, k_x2 = jax.random.split(key, 3)

    n_observations = 32
    n_actions = 8

    logical = init_policy_net_params(k_param, n_observations, n_actions)
    packed = pack_policy_net_params(logical)

    def check(x, name):
        out = jax.block_until_ready(policy_net_forward(x, packed))
        assert out.shape == (x.shape[0], n_actions), (name, out.shape)
        # Tight check against a reference that uses the same bf16 weight casts.
        ref_bf16 = _reference_forward(x, logical, bf16_weights=True)
        err_bf16 = float(jnp.max(jnp.abs(out - ref_bf16)))
        assert jnp.allclose(out, ref_bf16, atol=5e-3, rtol=5e-3), (name, err_bf16)
        # Loose sanity check against the exact-float32 PyTorch semantics.
        ref_f32 = _reference_forward(x, logical, bf16_weights=False)
        err_f32 = float(jnp.max(jnp.abs(out - ref_f32)))
        assert jnp.allclose(out, ref_f32, atol=1e-1, rtol=1e-1), (name, err_f32)

    # Small batch (B=2): padded to the sublane tile, single grid step.
    check(jax.random.normal(k_x1, (2, n_observations), jnp.float32), "small")
    # Larger batch (B=520): 4 grid steps on the "parallel" batch axis.
    check(jax.random.normal(k_x2, (520, n_observations), jnp.float32), "big")

    print("KERNEL_OK")
</pallas_src>

<mosaic_0001>
module attributes {stable_mosaic.version = 11 : i64} {
  func.func @policy_net_kernel(%arg0: i32, %arg1: memref<8x32xf32, #tpu.memory_space<vmem>>, %arg2: memref<32x384xbf16, #tpu.memory_space<vmem>>, %arg3: memref<384x384xbf16, #tpu.memory_space<vmem>>, %arg4: memref<384x128xbf16, #tpu.memory_space<vmem>>, %arg5: memref<8x384xf32, #tpu.memory_space<vmem>>, %arg6: memref<8x128xf32, #tpu.memory_space<vmem>>) attributes {dimension_semantics = [#tpu.dimension_semantics<parallel>], iteration_bounds = array<i64: 1>, scalar_prefetch = 0 : i64, scratch_operands = 0 : i64, tpu.core_type = #tpu.core_type<tc>, window_params = [{transform_indices = @transform_0, window_bounds = array<i64: 8, 32>}, {pipeline_mode = #tpu.pipeline_mode<synchronous>, transform_indices = @transform_1, window_bounds = array<i64: 32, 384>}, {pipeline_mode = #tpu.pipeline_mode<synchronous>, transform_indices = @transform_2, window_bounds = array<i64: 384, 384>}, {pipeline_mode = #tpu.pipeline_mode<synchronous>, transform_indices = @transform_3, window_bounds = array<i64: 384, 128>}, {pipeline_mode = #tpu.pipeline_mode<synchronous>, transform_indices = @transform_4, window_bounds = array<i64: 8, 384>}, {transform_indices = @transform_5, window_bounds = array<i64: 8, 128>}]} {
    %c0 = arith.constant 0 : index
    %c0_0 = arith.constant 0 : index
    %0 = vector.load %arg5[%c0, %c0_0] : memref<8x384xf32, #tpu.memory_space<vmem>>, vector<1x384xf32>
    %c1 = arith.constant 1 : index
    %c0_1 = arith.constant 0 : index
    %1 = vector.load %arg5[%c1, %c0_1] : memref<8x384xf32, #tpu.memory_space<vmem>>, vector<1x384xf32>
    %c2 = arith.constant 2 : index
    %c0_2 = arith.constant 0 : index
    %2 = vector.load %arg5[%c2, %c0_2] : memref<8x384xf32, #tpu.memory_space<vmem>>, vector<1x384xf32>
    %c3 = arith.constant 3 : index
    %c0_3 = arith.constant 0 : index
    %3 = vector.load %arg5[%c3, %c0_3] : memref<8x384xf32, #tpu.memory_space<vmem>>, vector<1x384xf32>
    %c4 = arith.constant 4 : index
    %c0_4 = arith.constant 0 : index
    %4 = vector.load %arg5[%c4, %c0_4] : memref<8x384xf32, #tpu.memory_space<vmem>>, vector<1x384xf32>
    %c5 = arith.constant 5 : index
    %c0_5 = arith.constant 0 : index
    %5 = vector.load %arg5[%c5, %c0_5] : memref<8x384xf32, #tpu.memory_space<vmem>>, vector<1x384xf32>
    %c6 = arith.constant 6 : index
    %c0_6 = arith.constant 0 : index
    %6 = vector.load %arg5[%c6, %c0_6] : memref<8x384xf32, #tpu.memory_space<vmem>>, vector<1x128xf32>
    %c0_7 = arith.constant 0 : index
    %c0_8 = arith.constant 0 : index
    %7 = vector.load %arg1[%c0_7, %c0_8] : memref<8x32xf32, #tpu.memory_space<vmem>>, vector<8x32xf32>
    %8 = arith.truncf %7 : vector<8x32xf32> to vector<8x32xbf16>
    %c0_9 = arith.constant 0 : index
    %c0_10 = arith.constant 0 : index
    %9 = vector.load %arg2[%c0_9, %c0_10] : memref<32x384xbf16, #tpu.memory_space<vmem>>, vector<32x384xbf16>
    %cst = arith.constant dense<0.000000e+00> : vector<8x384xf32>
    %10 = tpu.matmul %8, %9, %cst {dimension_numbers = #tpu.dot_dimension_numbers<[1], [0], [0], [1], [0, 0, 1, 1], [], []>} : vector<8x32xbf16>, vector<32x384xbf16>, vector<8x384xf32> -> vector<8x384xf32>
    %11 = vector.broadcast %0 : vector<1x384xf32> to vector<8x384xf32>
    %12 = arith.addf %10, %11 : vector<8x384xf32>
    %cst_11 = arith.constant dense<0.000000e+00> : vector<8xf32>
    %13 = vector.multi_reduction <add>, %12, %cst_11 [1] : vector<8x384xf32> to vector<8xf32>
    %14 = vector.shape_cast %13 : vector<8xf32> to vector<8x1xf32>
    %cst_12 = arith.constant 0.00333333341 : f32
    %15 = vector.broadcast %cst_12 : f32 to vector<8x1xf32>
    %16 = arith.mulf %14, %15 : vector<8x1xf32>
    %17 = vector.broadcast %16 : vector<8x1xf32> to vector<8x384xf32>
    %18 = arith.subf %12, %17 : vector<8x384xf32>
    %19 = arith.mulf %18, %18 : vector<8x384xf32>
    %cst_13 = arith.constant dense<0.000000e+00> : vector<8xf32>
    %20 = vector.multi_reduction <add>, %19, %cst_13 [1] : vector<8x384xf32> to vector<8xf32>
    %21 = vector.shape_cast %20 : vector<8xf32> to vector<8x1xf32>
    %22 = arith.mulf %16, %16 : vector<8x1xf32>
    %cst_14 = arith.constant 8.400000e+01 : f32
    %23 = vector.broadcast %cst_14 : f32 to vector<8x1xf32>
    %24 = arith.mulf %23, %22 : vector<8x1xf32>
    %25 = arith.subf %21, %24 : vector<8x1xf32>
    %cst_15 = arith.constant 0.00333333341 : f32
    %26 = vector.broadcast %cst_15 : f32 to vector<8x1xf32>
    %27 = arith.mulf %25, %26 : vector<8x1xf32>
    %cst_16 = arith.constant 0.000000e+00 : f32
    %28 = vector.broadcast %cst_16 : f32 to vector<8x1xf32>
    %29 = arith.maximumf %27, %28 : vector<8x1xf32>
    %cst_17 = arith.constant 9.99999974E-6 : f32
    %30 = vector.broadcast %cst_17 : f32 to vector<8x1xf32>
    %31 = arith.addf %29, %30 : vector<8x1xf32>
    %32 = math.rsqrt %31 : vector<8x1xf32>
    %33 = vector.broadcast %32 : vector<8x1xf32> to vector<8x384xf32>
    %34 = arith.mulf %18, %33 : vector<8x384xf32>
    %35 = vector.broadcast %1 : vector<1x384xf32> to vector<8x384xf32>
    %36 = arith.mulf %34, %35 : vector<8x384xf32>
    %37 = vector.broadcast %2 : vector<1x384xf32> to vector<8x384xf32>
    %38 = arith.addf %36, %37 : vector<8x384xf32>
    %cst_18 = arith.constant 0.000000e+00 : f32
    %39 = vector.broadcast %cst_18 : f32 to vector<8x384xf32>
    %40 = arith.maximumf %38, %39 : vector<8x384xf32>
    %41 = arith.truncf %40 : vector<8x384xf32> to vector<8x384xbf16>
    %c0_19 = arith.constant 0 : index
    %c0_20 = arith.constant 0 : index
    %42 = vector.load %arg3[%c0_19, %c0_20] : memref<384x384xbf16, #tpu.memory_space<vmem>>, vector<384x384xbf16>
    %cst_21 = arith.constant dense<0.000000e+00> : vector<8x384xf32>
    %43 = tpu.matmul %41, %42, %cst_21 {dimension_numbers = #tpu.dot_dimension_numbers<[1], [0], [0], [1], [0, 0, 1, 1], [], []>} : vector<8x384xbf16>, vector<384x384xbf16>, vector<8x384xf32> -> vector<8x384xf32>
    %44 = vector.broadcast %3 : vector<1x384xf32> to vector<8x384xf32>
    %45 = arith.addf %43, %44 : vector<8x384xf32>
    %cst_22 = arith.constant dense<0.000000e+00> : vector<8xf32>
    %46 = vector.multi_reduction <add>, %45, %cst_22 [1] : vector<8x384xf32> to vector<8xf32>
    %47 = vector.shape_cast %46 : vector<8xf32> to vector<8x1xf32>
    %cst_23 = arith.constant 0.00333333341 : f32
    %48 = vector.broadcast %cst_23 : f32 to vector<8x1xf32>
    %49 = arith.mulf %47, %48 : vector<8x1xf32>
    %50 = vector.broadcast %49 : vector<8x1xf32> to vector<8x384xf32>
    %51 = arith.subf %45, %50 : vector<8x384xf32>
    %52 = arith.mulf %51, %51 : vector<8x384xf32>
    %cst_24 = arith.constant dense<0.000000e+00> : vector<8xf32>
    %53 = vector.multi_reduction <add>, %52, %cst_24 [1] : vector<8x384xf32> to vector<8xf32>
    %54 = vector.shape_cast %53 : vector<8xf32> to vector<8x1xf32>
    %55 = arith.mulf %49, %49 : vector<8x1xf32>
    %cst_25 = arith.constant 8.400000e+01 : f32
    %56 = vector.broadcast %cst_25 : f32 to vector<8x1xf32>
    %57 = arith.mulf %56, %55 : vector<8x1xf32>
    %58 = arith.subf %54, %57 : vector<8x1xf32>
    %cst_26 = arith.constant 0.00333333341 : f32
    %59 = vector.broadcast %cst_26 : f32 to vector<8x1xf32>
    %60 = arith.mulf %58, %59 : vector<8x1xf32>
    %cst_27 = arith.constant 0.000000e+00 : f32
    %61 = vector.broadcast %cst_27 : f32 to vector<8x1xf32>
    %62 = arith.maximumf %60, %61 : vector<8x1xf32>
    %cst_28 = arith.constant 9.99999974E-6 : f32
    %63 = vector.broadcast %cst_28 : f32 to vector<8x1xf32>
    %64 = arith.addf %62, %63 : vector<8x1xf32>
    %65 = math.rsqrt %64 : vector<8x1xf32>
    %66 = vector.broadcast %65 : vector<8x1xf32> to vector<8x384xf32>
    %67 = arith.mulf %51, %66 : vector<8x384xf32>
    %68 = vector.broadcast %4 : vector<1x384xf32> to vector<8x384xf32>
    %69 = arith.mulf %67, %68 : vector<8x384xf32>
    %70 = vector.broadcast %5 : vector<1x384xf32> to vector<8x384xf32>
    %71 = arith.addf %69, %70 : vector<8x384xf32>
    %cst_29 = arith.constant 0.000000e+00 : f32
    %72 = vector.broadcast %cst_29 : f32 to vector<8x384xf32>
    %73 = arith.maximumf %71, %72 : vector<8x384xf32>
    %74 = arith.truncf %73 : vector<8x384xf32> to vector<8x384xbf16>
    %c0_30 = arith.constant 0 : index
    %c0_31 = arith.constant 0 : index
    %75 = vector.load %arg4[%c0_30, %c0_31] : memref<384x128xbf16, #tpu.memory_space<vmem>>, vector<384x128xbf16>
    %cst_32 = arith.constant dense<0.000000e+00> : vector<8x128xf32>
    %76 = tpu.matmul %74, %75, %cst_32 {dimension_numbers = #tpu.dot_dimension_numbers<[1], [0], [0], [1], [0, 0, 1, 1], [], []>} : vector<8x384xbf16>, vector<384x128xbf16>, vector<8x128xf32> -> vector<8x128xf32>
    %77 = vector.broadcast %6 : vector<1x128xf32> to vector<8x128xf32>
    %78 = arith.addf %76, %77 : vector<8x128xf32>
    %c0_33 = arith.constant 0 : index
    %c0_34 = arith.constant 0 : index
    %79 = vector.load %arg6[%c0_33, %c0_34] : memref<8x128xf32, #tpu.memory_space<vmem>>, vector<8x128xf32>
    tpu.vector_store %arg6[%c0_33, %c0_34], %78 {strides = array<i32>} : memref<8x128xf32, #tpu.memory_space<vmem>>, vector<8x128xf32>,
    return
  }
  func.func @transform_0(%arg0: i32) -> (i32, i32) {
    %c0_i32 = arith.constant 0 : i32
    %c0_i32_0 = arith.constant 0 : i32
    return %arg0, %c0_i32 : i32, i32
  }
  func.func @transform_1(%arg0: i32) -> (i32, i32) {
    %c0_i32 = arith.constant 0 : i32
    %c0_i32_0 = arith.constant 0 : i32
    %c0_i32_1 = arith.constant 0 : i32
    return %c0_i32, %c0_i32_0 : i32, i32
  }
  func.func @transform_2(%arg0: i32) -> (i32, i32) {
    %c0_i32 = arith.constant 0 : i32
    %c0_i32_0 = arith.constant 0 : i32
    %c0_i32_1 = arith.constant 0 : i32
    return %c0_i32, %c0_i32_0 : i32, i32
  }
  func.func @transform_3(%arg0: i32) -> (i32, i32) {
    %c0_i32 = arith.constant 0 : i32
    %c0_i32_0 = arith.constant 0 : i32
    %c0_i32_1 = arith.constant 0 : i32
    return %c0_i32, %c0_i32_0 : i32, i32
  }
  func.func @transform_4(%arg0: i32) -> (i32, i32) {
    %c0_i32 = arith.constant 0 : i32
    %c0_i32_0 = arith.constant 0 : i32
    %c0_i32_1 = arith.constant 0 : i32
    return %c0_i32, %c0_i32_0 : i32, i32
  }
  func.func @transform_5(%arg0: i32) -> (i32, i32) {
    %c0_i32 = arith.constant 0 : i32
    %c0_i32_0 = arith.constant 0 : i32
    return %arg0, %c0_i32 : i32, i32
  }
}

</mosaic_0001>

<llo_original>
// kernel: tpu_custom_call.1
$region0: #{tpu_custom_call.1}
  #allocation0 [shape = 'u32[]', space=smem, size = 0x4, offset = 0x4, fixed_abs, tag = 'smem constant byte address 0x4 - core index']
  #allocation1 [shape = 'u32[144,128]{1,0:T(1,128)}', space=vmem, size = 0x12000, scoped, tag = 'internal scratch']
  %s0 = inlined_call_operand.hbm [shape: f32[8,32], index: 0, kind: input, shape index: {}]
  %s1 = inlined_call_operand.hbm [shape: bf16[32,384], index: 1, kind: input, shape index: {}]
  %s2 = inlined_call_operand.hbm [shape: bf16[384,384], index: 2, kind: input, shape index: {}]
  %s3 = inlined_call_operand.hbm [shape: bf16[384,128], index: 3, kind: input, shape index: {}]
  %s4 = inlined_call_operand.hbm [shape: f32[8,384], index: 4, kind: input, shape index: {}]
  %s5 = inlined_call_operand.hbm [shape: f32[8,128], index: 5, kind: output, shape index: {}]
  %s6 = sld [smem:[#allocation0]]
  $region50: #{tpu_custom_call.1} parent=0
    _
  %s8 = ssub.s32 1, %s6
  %s9 = scalar_select 0, %s8, %s6
  $region1: #{tpu_custom_call.1} parent=0
    #allocation2 [shape = 'u8[4096]{0}', space=vmem, size = 0x1000, scoped, tag = 'input window, operand 0, single buffered']
    #allocation3 [shape = 's32[1]{0}', space=sflag, size = 0x4, scoped, tag = 'scoped memory for tpu_custom_call.1']
    #allocation4 [shape = 's32[1]{0}', space=sflag, size = 0x4, scoped, tag = 'scoped memory for tpu_custom_call.1']
    #allocation5 [shape = 'u8[24576]{0}', space=vmem, size = 0x6000, scoped, tag = 'input window, operand 1, single buffered']
    #allocation6 [shape = 's32[1]{0}', space=sflag, size = 0x4, scoped, tag = 'scoped memory for tpu_custom_call.1']
    #allocation7 [shape = 'u8[294912]{0}', space=vmem, size = 0x48000, scoped, tag = 'input window, operand 2, single buffered']
    #allocation8 [shape = 'u8[98304]{0}', space=vmem, size = 0x18000, scoped, tag = 'input window, operand 3, single buffered']
    #allocation9 [shape = 's32[1]{0}', space=sflag, size = 0x4, scoped, tag = 'scoped memory for tpu_custom_call.1']
    #allocation10 [shape = 'u8[12288]{0}', space=vmem, size = 0x3000, scoped, tag = 'input window, operand 4, single buffered']
    #allocation11 [shape = 'u8[4096]{0}', space=vmem, size = 0x1000, scoped, tag = 'output window, operand 0, single buffered']
    %10 = vsyncpa [#allocation3], 0
    %11 = vsyncpa [#allocation6], 0
    %12 = vsyncpa [#allocation9], 0
    %13 = vsyncpa [#allocation4], 0
    // Predicated region
    $region2: #{tpu_custom_call.1} parent=1 // pred_check
      _
    $region3: #{tpu_custom_call.1} parent=1 // pred_check_branch
      %15 = sbr.rel (0) target = $region5
    $region4: #{tpu_custom_call.1} parent=1 // pred_region
      %s17 = ssub.s32 128, 128
      %18 = vsyncadd [#allocation3], %s17
      %s20 = sshll.u32 [#allocation2], 4
      %s21 = int_to_ptr.vmem [resolvable:$true] %s20
      %23 = dma.hbm_to_vmem [thread:$0]  %s0, 128, %s21, [#allocation3]
    $region5: #{tpu_custom_call.1} parent=1 // pred_fallthru
      _
    // Predicated region
    $region6: #{tpu_custom_call.1} parent=1 // pred_check
      _
    $region7: #{tpu_custom_call.1} parent=1 // pred_check_branch
      %25 = sbr.rel (0) target = $region9
    $region8: #{tpu_custom_call.1} parent=1 // pred_region
      %s27 = ssub.s32 768, 768
      %28 = vsyncadd [#allocation6], %s27
      %s29 = sshll.u32 [#allocation5], 4
      %s30 = int_to_ptr.vmem [resolvable:$true] %s29
      %35 = dma.hbm_to_vmem [thread:$0]  %s1, 768, %s30, [#allocation6], 192, 192, 12
    $region9: #{tpu_custom_call.1} parent=1 // pred_fallthru
      _
    // Predicated region
    $region10: #{tpu_custom_call.1} parent=1 // pred_check
      _
    $region11: #{tpu_custom_call.1} parent=1 // pred_check_branch
      %37 = sbr.rel (0) target = $region13
    $region12: #{tpu_custom_call.1} parent=1 // pred_region
      %s39 = ssub.s32 9216, 9216
      %40 = vsyncadd [#allocation6], %s39
      %s41 = sshll.u32 [#allocation7], 4
      %s42 = int_to_ptr.vmem [resolvable:$true] %s41
      %47 = dma.hbm_to_vmem [thread:$0]  %s2, 9216, %s42, [#allocation6], 192, 192, 12
    $region13: #{tpu_custom_call.1} parent=1 // pred_fallthru
      _
    // Predicated region
    $region14: #{tpu_custom_call.1} parent=1 // pred_check
      _
    $region15: #{tpu_custom_call.1} parent=1 // pred_check_branch
      %49 = sbr.rel (0) target = $region17
    $region16: #{tpu_custom_call.1} parent=1 // pred_region
      %s51 = ssub.s32 3072, 3072
      %52 = vsyncadd [#allocation9], %s51
      %s53 = sshll.u32 [#allocation8], 4
      %s54 = int_to_ptr.vmem [resolvable:$true] %s53
      %59 = dma.hbm_to_vmem [thread:$0]  %s3, 3072, %s54, [#allocation9], 64, 64, 4
    $region17: #{tpu_custom_call.1} parent=1 // pred_fallthru
      _
    // Predicated region
    $region18: #{tpu_custom_call.1} parent=1 // pred_check
      _
    $region19: #{tpu_custom_call.1} parent=1 // pred_check_branch
      %61 = sbr.rel (0) target = $region21
    $region20: #{tpu_custom_call.1} parent=1 // pred_region
      %s63 = ssub.s32 384, 384
      %64 = vsyncadd [#allocation9], %s63
      %s66 = sshll.u32 [#allocation10], 4
      %s67 = int_to_ptr.vmem [resolvable:$true] %s66
      %69 = dma.hbm_to_vmem [thread:$0]  %s4, 384, %s67, [#allocation9]
    $region21: #{tpu_custom_call.1} parent=1 // pred_fallthru
      _
    // Predicated region
    $region22: #{tpu_custom_call.1} parent=1 // pred_check
      _
    $region23: #{tpu_custom_call.1} parent=1 // pred_check_branch
      %71 = sbr.rel (0) target = $region25
    $region24: #{tpu_custom_call.1} parent=1 // pred_region
      %72 = dma.done [#allocation3], 128
    $region25: #{tpu_custom_call.1} parent=1 // pred_fallthru
      _
    // Predicated region
    $region26: #{tpu_custom_call.1} parent=1 // pred_check
      _
    $region27: #{tpu_custom_call.1} parent=1 // pred_check_branch
      %74 = sbr.rel (0) target = $region29
    $region28: #{tpu_custom_call.1} parent=1 // pred_region
      %75 = dma.done [#allocation6], 768
    $region29: #{tpu_custom_call.1} parent=1 // pred_fallthru
      _
    // Predicated region
    $region30: #{tpu_custom_call.1} parent=1 // pred_check
      _
    $region31: #{tpu_custom_call.1} parent=1 // pred_check_branch
      %77 = sbr.rel (0) target = $region33
    $region32: #{tpu_custom_call.1} parent=1 // pred_region
      %78 = dma.done [#allocation6], 9216
    $region33: #{tpu_custom_call.1} parent=1 // pred_fallthru
      _
    // Predicated region
    $region34: #{tpu_custom_call.1} parent=1 // pred_check
      _
    $region35: #{tpu_custom_call.1} parent=1 // pred_check_branch
      %80 = sbr.rel (0) target = $region37
    $region36: #{tpu_custom_call.1} parent=1 // pred_region
      %81 = dma.done [#allocation9], 3072
    $region37: #{tpu_custom_call.1} parent=1 // pred_fallthru
      _
    // Predicated region
    $region38: #{tpu_custom_call.1} parent=1 // pred_check
      _
    $region39: #{tpu_custom_call.1} parent=1 // pred_check_branch
      %83 = sbr.rel (0) target = $region41
    $region40: #{tpu_custom_call.1} parent=1 // pred_region
      %84 = dma.done [#allocation9], 384
    $region41: #{tpu_custom_call.1} parent=1 // pred_fallthru
      _
    %v86 = vld [vmem:[#allocation10] ss:$8 sm:$0x7]
    %s87 = scalar_lea.vmem [#allocation10], 1
    %v88 = vld [vmem:[%s87] ss:$8 sm:$0x7]
    %s89 = scalar_lea.vmem [#allocation10], 2
    %v90 = vld [vmem:[%s89] ss:$8 sm:$0x7]
    %s91 = scalar_lea.vmem [#allocation10], 3
    %v92 = vld [vmem:[%s91] ss:$8 sm:$0x7]
    %s93 = scalar_lea.vmem [#allocation10], 4
    %v94 = vld [vmem:[%s93] ss:$8 sm:$0x7]
    %s95 = scalar_lea.vmem [#allocation10], 5
    %v96 = vld [vmem:[%s95] ss:$8 sm:$0x7]
    %v97 = vld [vmem:[#allocation10 + $0x6] ss:$0 sm:$0xff]
    %v98 = vld [vmem:[#allocation2] sm:$0xff]
    %v99 = vpack.c.bf16 %v98, %v98
    %v100 = vld [vmem:[#allocation5] sm:$0xff]
    %v101 = vld [vmem:[#allocation5 + $0x8] sm:$0xf]
    %v102 = vld [vmem:[#allocation5 + $0xc] sm:$0xff]
    %v103 = vld [vmem:[#allocation5 + $0x14] sm:$0xf]
    %v104 = vld [vmem:[#allocation5 + $0x18] sm:$0xff]
    %v105 = vld [vmem:[#allocation5 + $0x20] sm:$0xf]
    %v106 = vld [vmem:[#allocation5 + $0x24] sm:$0xff]
    %v107 = vld [vmem:[#allocation5 + $0x2c] sm:$0xf]
    %v109 = vlaneseq
    %v110 = vshrl.u32 %v109, 7
    %v111 = vsub.s32 0, %v110
    %v112 = vrot.slane %v86, %v111
    %v113 = vlaneseq
    %v114 = vshrl.u32 %v113, 7
    %v115 = vsub.s32 1, %v114
    %v116 = vrot.slane %v86, %v115
    %v117 = vlaneseq
    %v118 = vshrl.u32 %v117, 7
    %v119 = vsub.s32 2, %v118
    %v120 = vrot.slane %v86, %v119
    %v132 = vunpack.c.l.b16 %v100
    %v133 = vunpack.c.h.b16 %v100
    %v134 = vunpack.c.l.b16 %v101
    %v135 = vunpack.c.l.b16 %v102
    %v136 = vunpack.c.h.b16 %v102
    %v137 = vunpack.c.l.b16 %v103
    %v138 = vunpack.c.l.b16 %v104
    %v139 = vunpack.c.h.b16 %v104
    %v140 = vunpack.c.l.b16 %v105
    %v141 = vunpack.c.l.b16 %v106
    %v142 = vunpack.c.h.b16 %v106
    %v143 = vunpack.c.l.b16 %v107
    %v144 = vpack.c.b16 %v135, %v132
    %v145 = vpack.c.b16 %v136, %v133
    %v146 = vpack.c.b16 %v137, %v134
    %v147 = vpack.c.b16 %v141, %v138
    %v148 = vpack.c.b16 %v142, %v139
    %v149 = vpack.c.b16 %v143, %v140
    %vm156 = vcmask 261120
    %v158 = vsel %vm156, %v99, 0
    %160 = vmatprep.subr.bf16.mxu0 %v145
    %161 = vmatpush1.bf16.msra.mxu0 %v144
    %162 = vmatprep.subr.bf16.mxu0 %v148
    %163 = vmatpush1.bf16.msra.mxu0 %v147
    %164 = vmatprep.subr.bf16.mxu0 0
    %165 = vmatpush1.bf16.msra.mxu0 0
    %166 = vmatprep.subr.bf16.mxu0 0
    %167 = vmatpush1.bf16.msra.mxu0 0
    %168 = vmatprep.subr.bf16.mxu0 0
    %169 = vmatpush1.bf16.msra.mxu0 0
    %170 = vmatprep.subr.bf16.mxu0 0
    %171 = vmatpush1.bf16.msra.mxu0 0
    %172 = vmatprep.subr.bf16.mxu0 0
    %173 = vmatpush1.bf16.msra.mxu0 0
    %174 = vmatprep.subr.bf16.mxu0 0
    %175 = vmatpush1.bf16.msra.mxu0 0
    %176 = vmatprep.subr.bf16.mxu0 0
    %177 = vmatpush1.bf16.msra.mxu0 0
    %178 = vmatprep.subr.bf16.mxu0 0
    %179 = vmatpush1.bf16.msra.mxu0 0
    %180 = vmatprep.subr.bf16.mxu0 0
    %181 = vmatpush1.bf16.msra.mxu0 0
    %182 = vmatprep.subr.bf16.mxu0 0
    %183 = vmatpush1.bf16.msra.mxu0 0
    %184 = vmatprep.subr.bf16.mxu0 0
    %185 = vmatpush1.bf16.msra.mxu0 0
    %186 = vmatprep.subr.bf16.mxu0 0
    %187 = vmatpush1.bf16.msra.mxu0 0
    %188 = vmatprep.subr.bf16.mxu0 0
    %189 = vmatpush1.bf16.msra.mxu0 0
    %190 = vmatprep.subr.bf16.mxu0 0
    %191 = vmatpush1.bf16.msra.mxu0 0
    %192 = vmatprep.mubr.bf16.mxu0 0
    %193 = vmatmul.mubr.bf16.gmra.mrb[0].mxu0 %v158
    %v194 = vpop.f32.mrb[0].mxu0
    %v195 = vadd.f32 %v112, %v194
    %v196 = vpop.f32.mrb[0].mxu0
    %v197 = vadd.f32 %v116, %v196
    %v198 = vpop.f32.mrb[0].mxu0
    %v199 = vpop.f32.mrb[0].mxu0
    %200 = vdwg.mxu0
    %201 = vmatprep.subr.bf16.mxu0 0
    %202 = vmatpush1.bf16.msra.mxu0 %v146
    %203 = vmatprep.subr.bf16.mxu0 0
    %204 = vmatpush1.bf16.msra.mxu0 %v149
    %205 = vmatprep.subr.bf16.mxu0 0
    %206 = vmatpush1.bf16.msra.mxu0 0
    %207 = vmatprep.subr.bf16.mxu0 0
    %208 = vmatpush1.bf16.msra.mxu0 0
    %209 = vmatprep.subr.bf16.mxu0 0
    %210 = vmatpush1.bf16.msra.mxu0 0
    %211 = vmatprep.subr.bf16.mxu0 0
    %212 = vmatpush1.bf16.msra.mxu0 0
    %213 = vmatprep.subr.bf16.mxu0 0
    %214 = vmatpush1.bf16.msra.mxu0 0
    %215 = vmatprep.subr.bf16.mxu0 0
    %216 = vmatpush1.bf16.msra.mxu0 0
    %217 = vmatprep.subr.bf16.mxu0 0
    %218 = vmatpush1.bf16.msra.mxu0 0
    %219 = vmatprep.subr.bf16.mxu0 0
    %220 = vmatpush1.bf16.msra.mxu0 0
    %221 = vmatprep.subr.bf16.mxu0 0
    %222 = vmatpush1.bf16.msra.mxu0 0
    %223 = vmatprep.subr.bf16.mxu0 0
    %224 = vmatpush1.bf16.msra.mxu0 0
    %225 = vmatprep.subr.bf16.mxu0 0
    %226 = vmatpush1.bf16.msra.mxu0 0
    %227 = vmatprep.subr.bf16.mxu0 0
    %228 = vmatpush1.bf16.msra.mxu0 0
    %229 = vmatprep.subr.bf16.mxu0 0
    %230 = vmatpush1.bf16.msra.mxu0 0
    %231 = vmatprep.subr.bf16.mxu0 0
    %232 = vmatpush1.bf16.msra.mxu0 0
    %233 = vmatprep.mubr.bf16.mxu0 0
    %234 = vmatmul.mubr.bf16.gmra.mrb[0].mxu0 %v158
    %v235 = vpop.f32.mrb[0].mxu0
    %v236 = vadd.f32 %v120, %v235
    %v237 = vpop.f32.mrb[0].mxu0
    %v238 = vpop.f32.mrb[0].mxu0
    %v239 = vpop.f32.mrb[0].mxu0
    %240 = vdwg.mxu0
    %v241 = vadd.f32 %v195, %v197
    %v242 = vadd.f32 %v241, %v236
    %243 = vadd.xlane.f32.xlu0 %v242
    %v244 = vpop.xlane.xlu0 %243
    %v245 = vmul.f32 %v244, 0.0033333334
    %v246 = vsub.f32 %v195, %v245
    %v247 = vsub.f32 %v197, %v245
    %v248 = vsub.f32 %v236, %v245
    %v249 = vmul.f32 %v246, %v246
    %v250 = vmul.f32 %v247, %v247
    %v251 = vmul.f32 %v248, %v248
    %v252 = vadd.f32 %v249, %v250
    %v253 = vadd.f32 %v252, %v251
    %254 = vadd.xlane.f32.xlu0 %v253
    %v255 = vpop.xlane.xlu0 %254
    %v256 = vmul.f32 %v245, %v245
    %v257 = vmul.f32 %v256, 84.0
    %v258 = vsub.f32 %v255, %v257
    %v259 = vmul.f32 %v258, 0.0033333334
    %v260 = vmax.f32 %v259, 0.0
    %v261 = vadd.f32 %v260, 1e-05
    %v262 = vrsqrt.pop %v261
    %v263 = vmul.f32 %v246, %v262
    %v264 = vmul.f32 %v247, %v262
    %v265 = vmul.f32 %v248, %v262
    %v267 = vlaneseq
    %v268 = vshrl.u32 %v267, 7
    %v269 = vsub.s32 0, %v268
    %v270 = vrot.slane %v88, %v269
    %v271 = vlaneseq
    %v272 = vshrl.u32 %v271, 7
    %v273 = vsub.s32 1, %v272
    %v274 = vrot.slane %v88, %v273
    %v275 = vlaneseq
    %v276 = vshrl.u32 %v275, 7
    %v277 = vsub.s32 2, %v276
    %v278 = vrot.slane %v88, %v277
    %v282 = vmul.f32 %v263, %v270
    %v283 = vmul.f32 %v264, %v274
    %v284 = vmul.f32 %v265, %v278
    %v286 = vlaneseq
    %v287 = vshrl.u32 %v286, 7
    %v288 = vsub.s32 0, %v287
    %v289 = vrot.slane %v90, %v288
    %v290 = vlaneseq
    %v291 = vshrl.u32 %v290, 7
    %v292 = vsub.s32 1, %v291
    %v293 = vrot.slane %v90, %v292
    %v294 = vlaneseq
    %v295 = vshrl.u32 %v294, 7
    %v296 = vsub.s32 2, %v295
    %v297 = vrot.slane %v90, %v296
    %v301 = vadd.f32 %v282, %v289
    %v302 = vadd.f32 %v283, %v293
    %v303 = vadd.f32 %v284, %v297
    %v304 = vmax.f32 %v301, 0.0
    %v305 = vmax.f32 %v302, 0.0
    %v306 = vmax.f32 %v303, 0.0
    %v307 = vpack.c.bf16 %v304, %v304
    %v308 = vpack.c.bf16 %v305, %v305
    %v309 = vpack.c.bf16 %v306, %v306
    %v310 = vld [vmem:[#allocation7] sm:$0xff]
    %v311 = vld [vmem:[#allocation7 + $0x8] sm:$0xf]
    %v312 = vld [vmem:[#allocation7 + $0xc] sm:$0xff]
    %v313 = vld [vmem:[#allocation7 + $0x14] sm:$0xf]
    %v314 = vld [vmem:[#allocation7 + $0x18] sm:$0xff]
    %v315 = vld [vmem:[#allocation7 + $0x20] sm:$0xf]
    %v316 = vld [vmem:[#allocation7 + $0x24] sm:$0xff]
    %v317 = vld [vmem:[#allocation7 + $0x2c] sm:$0xf]
    %v318 = vld [vmem:[#allocation7 + $0x30] sm:$0xff]
    %v319 = vld [vmem:[#allocation7 + $0x38] sm:$0xf]
    %v320 = vld [vmem:[#allocation7 + $0x3c] sm:$0xff]
    %v321 = vld [vmem:[#allocation7 + $0x44] sm:$0xf]
    %v322 = vld [vmem:[#allocation7 + $0x48] sm:$0xff]
    %v323 = vld [vmem:[#allocation7 + $0x50] sm:$0xf]
    %v324 = vld [vmem:[#allocation7 + $0x54] sm:$0xff]
    %v325 = vld [vmem:[#allocation7 + $0x5c] sm:$0xf]
    %v326 = vld [vmem:[#allocation7 + $0x60] sm:$0xff]
    %v327 = vld [vmem:[#allocation7 + $0x68] sm:$0xf]
    %v328 = vld [vmem:[#allocation7 + $0x6c] sm:$0xff]
    %v329 = vld [vmem:[#allocation7 + $0x74] sm:$0xf]
    %v330 = vld [vmem:[#allocation7 + $0x78] sm:$0xff]
    %v331 = vld [vmem:[#allocation7 + $0x80] sm:$0xf]
    %v332 = vld [vmem:[#allocation7 + $0x84] sm:$0xff]
    %v333 = vld [vmem:[#allocation7 + $0x8c] sm:$0xf]
    %v334 = vld [vmem:[#allocation7 + $0x90] sm:$0xff]
    %v335 = vld [vmem:[#allocation7 + $0x98] sm:$0xf]
    %v336 = vld [vmem:[#allocation7 + $0x9c] sm:$0xff]
    %v337 = vld [vmem:[#allocation7 + $0xa4] sm:$0xf]
    %v338 = vld [vmem:[#allocation7 + $0xa8] sm:$0xff]
    %v339 = vld [vmem:[#allocation7 + $0xb0] sm:$0xf]
    %v340 = vld [vmem:[#allocation7 + $0xb4] sm:$0xff]
    %v341 = vld [vmem:[#allocation7 + $0xbc] sm:$0xf]
    %v342 = vld [vmem:[#allocation7 + $0xc0] sm:$0xff]
    %v343 = vld [vmem:[#allocation7 + $0xc8] sm:$0xf]
    %v344 = vld [vmem:[#allocation7 + $0xcc] sm:$0xff]
    %v345 = vld [vmem:[#allocation7 + $0xd4] sm:$0xf]
    %v346 = vld [vmem:[#allocation7 + $0xd8] sm:$0xff]
    %v347 = vld [vmem:[#allocation7 + $0xe0] sm:$0xf]
    %v348 = vld [vmem:[#allocation7 + $0xe4] sm:$0xff]
    %v349 = vld [vmem:[#allocation7 + $0xec] sm:$0xf]
    %v350 = vld [vmem:[#allocation7 + $0xf0] sm:$0xff]
    %v351 = vld [vmem:[#allocation7 + $0xf8] sm:$0xf]
    %v352 = vld [vmem:[#allocation7 + $0xfc] sm:$0xff]
    %v353 = vld [vmem:[#allocation7 + $0x104] sm:$0xf]
    %v354 = vld [vmem:[#allocation7 + $0x108] sm:$0xff]
    %v355 = vld [vmem:[#allocation7 + $0x110] sm:$0xf]
    %v356 = vld [vmem:[#allocation7 + $0x114] sm:$0xff]
    %v357 = vld [vmem:[#allocation7 + $0x11c] sm:$0xf]
    %v358 = vld [vmem:[#allocation7 + $0x120] sm:$0xff]
    %v359 = vld [vmem:[#allocation7 + $0x128] sm:$0xf]
    %v360 = vld [vmem:[#allocation7 + $0x12c] sm:$0xff]
    %v361 = vld [vmem:[#allocation7 + $0x134] sm:$0xf]
    %v362 = vld [vmem:[#allocation7 + $0x138] sm:$0xff]
    %v363 = vld [vmem:[#allocation7 + $0x140] sm:$0xf]
    %v364 = vld [vmem:[#allocation7 + $0x144] sm:$0xff]
    %v365 = vld [vmem:[#allocation7 + $0x14c] sm:$0xf]
    %v366 = vld [vmem:[#allocation7 + $0x150] sm:$0xff]
    %v367 = vld [vmem:[#allocation7 + $0x158] sm:$0xf]
    %v368 = vld [vmem:[#allocation7 + $0x15c] sm:$0xff]
    %v369 = vld [vmem:[#allocation7 + $0x164] sm:$0xf]
    %v370 = vld [vmem:[#allocation7 + $0x168] sm:$0xff]
    %v371 = vld [vmem:[#allocation7 + $0x170] sm:$0xf]
    %v372 = vld [vmem:[#allocation7 + $0x174] sm:$0xff]
    %v373 = vld [vmem:[#allocation7 + $0x17c] sm:$0xf]
    %v374 = vld [vmem:[#allocation7 + $0x180] sm:$0xff]
    %v375 = vld [vmem:[#allocation7 + $0x188] sm:$0xf]
    %v376 = vld [vmem:[#allocation7 + $0x18c] sm:$0xff]
    %v377 = vld [vmem:[#allocation7 + $0x194] sm:$0xf]
    %v378 = vld [vmem:[#allocation7 + $0x198] sm:$0xff]
    %v379 = vld [vmem:[#allocation7 + $0x1a0] sm:$0xf]
    %v380 = vld [vmem:[#allocation7 + $0x1a4] sm:$0xff]
    %v381 = vld [vmem:[#allocation7 + $0x1ac] sm:$0xf]
    %v382 = vld [vmem:[#allocation7 + $0x1b0] sm:$0xff]
    %v383 = vld [vmem:[#allocation7 + $0x1b8] sm:$0xf]
    %v384 = vld [vmem:[#allocation7 + $0x1bc] sm:$0xff]
    %v385 = vld [vmem:[#allocation7 + $0x1c4] sm:$0xf]
    %v386 = vld [vmem:[#allocation7 + $0x1c8] sm:$0xff]
    %v387 = vld [vmem:[#allocation7 + $0x1d0] sm:$0xf]
    %v388 = vld [vmem:[#allocation7 + $0x1d4] sm:$0xff]
    %v389 = vld [vmem:[#allocation7 + $0x1dc] sm:$0xf]
    %v390 = vld [vmem:[#allocation7 + $0x1e0] sm:$0xff]
    %v391 = vld [vmem:[#allocation7 + $0x1e8] sm:$0xf]
    %v392 = vld [vmem:[#allocation7 + $0x1ec] sm:$0xff]
    %v393 = vld [vmem:[#allocation7 + $0x1f4] sm:$0xf]
    %v394 = vld [vmem:[#allocation7 + $0x1f8] sm:$0xff]
    %v395 = vld [vmem:[#allocation7 + $0x200] sm:$0xf]
    %v396 = vld [vmem:[#allocation7 + $0x204] sm:$0xff]
    %v397 = vld [vmem:[#allocation7 + $0x20c] sm:$0xf]
    %v398 = vld [vmem:[#allocation7 + $0x210] sm:$0xff]
    %v399 = vld [vmem:[#allocation7 + $0x218] sm:$0xf]
    %v400 = vld [vmem:[#allocation7 + $0x21c] sm:$0xff]
    %v401 = vld [vmem:[#allocation7 + $0x224] sm:$0xf]
    %v402 = vld [vmem:[#allocation7 + $0x228] sm:$0xff]
    %v403 = vld [vmem:[#allocation7 + $0x230] sm:$0xf]
    %v404 = vld [vmem:[#allocation7 + $0x234] sm:$0xff]
    %v405 = vld [vmem:[#allocation7 + $0x23c] sm:$0xf]
    %v407 = vlaneseq
    %v408 = vshrl.u32 %v407, 7
    %v409 = vsub.s32 0, %v408
    %v410 = vrot.slane %v92, %v409
    %v411 = vlaneseq
    %v412 = vshrl.u32 %v411, 7
    %v413 = vsub.s32 1, %v412
    %v414 = vrot.slane %v92, %v413
    %v415 = vlaneseq
    %v416 = vshrl.u32 %v415, 7
    %v417 = vsub.s32 2, %v416
    %v418 = vrot.slane %v92, %v417
    %v518 = vunpack.c.l.b16 %v310
    %v519 = vunpack.c.h.b16 %v310
    %v520 = vunpack.c.l.b16 %v311
    %v521 = vunpack.c.l.b16 %v312
    %v522 = vunpack.c.h.b16 %v312
    %v523 = vunpack.c.l.b16 %v313
    %v524 = vunpack.c.l.b16 %v314
    %v525 = vunpack.c.h.b16 %v314
    %v526 = vunpack.c.l.b16 %v315
    %v527 = vunpack.c.l.b16 %v316
    %v528 = vunpack.c.h.b16 %v316
    %v529 = vunpack.c.l.b16 %v317
    %v530 = vunpack.c.l.b16 %v318
    %v531 = vunpack.c.h.b16 %v318
    %v532 = vunpack.c.l.b16 %v319
    %v533 = vunpack.c.l.b16 %v320
    %v534 = vunpack.c.h.b16 %v320
    %v535 = vunpack.c.l.b16 %v321
    %v536 = vunpack.c.l.b16 %v322
    %v537 = vunpack.c.h.b16 %v322
    %v538 = vunpack.c.l.b16 %v323
    %v539 = vunpack.c.l.b16 %v324
    %v540 = vunpack.c.h.b16 %v324
    %v541 = vunpack.c.l.b16 %v325
    %v542 = vunpack.c.l.b16 %v326
    %v543 = vunpack.c.h.b16 %v326
    %v544 = vunpack.c.l.b16 %v327
    %v545 = vunpack.c.l.b16 %v328
    %v546 = vunpack.c.h.b16 %v328
    %v547 = vunpack.c.l.b16 %v329
    %v548 = vunpack.c.l.b16 %v330
    %v549 = vunpack.c.h.b16 %v330
    %v550 = vunpack.c.l.b16 %v331
    %v551 = vunpack.c.l.b16 %v332
    %v552 = vunpack.c.h.b16 %v332
    %v553 = vunpack.c.l.b16 %v333
    %v554 = vunpack.c.l.b16 %v334
    %v555 = vunpack.c.h.b16 %v334
    %v556 = vunpack.c.l.b16 %v335
    %v557 = vunpack.c.l.b16 %v336
    %v558 = vunpack.c.h.b16 %v336
    %v559 = vunpack.c.l.b16 %v337
    %v560 = vunpack.c.l.b16 %v338
    %v561 = vunpack.c.h.b16 %v338
    %v562 = vunpack.c.l.b16 %v339
    %v563 = vunpack.c.l.b16 %v340
    %v564 = vunpack.c.h.b16 %v340
    %v565 = vunpack.c.l.b16 %v341
    %v566 = vunpack.c.l.b16 %v342
    %v567 = vunpack.c.h.b16 %v342
    %v568 = vunpack.c.l.b16 %v343
    %v569 = vunpack.c.l.b16 %v344
    %v570 = vunpack.c.h.b16 %v344
    %v571 = vunpack.c.l.b16 %v345
    %v572 = vunpack.c.l.b16 %v346
    %v573 = vunpack.c.h.b16 %v346
    %v574 = vunpack.c.l.b16 %v347
    %v575 = vunpack.c.l.b16 %v348
    %v576 = vunpack.c.h.b16 %v348
    %v577 = vunpack.c.l.b16 %v349
    %v578 = vunpack.c.l.b16 %v350
    %v579 = vunpack.c.h.b16 %v350
    %v580 = vunpack.c.l.b16 %v351
    %v581 = vunpack.c.l.b16 %v352
    %v582 = vunpack.c.h.b16 %v352
    %v583 = vunpack.c.l.b16 %v353
    %v584 = vunpack.c.l.b16 %v354
    %v585 = vunpack.c.h.b16 %v354
    %v586 = vunpack.c.l.b16 %v355
    %v587 = vunpack.c.l.b16 %v356
    %v588 = vunpack.c.h.b16 %v356
    %v589 = vunpack.c.l.b16 %v357
    %v590 = vunpack.c.l.b16 %v358
    %v591 = vunpack.c.h.b16 %v358
    %v592 = vunpack.c.l.b16 %v359
    %v593 = vunpack.c.l.b16 %v360
    %v594 = vunpack.c.h.b16 %v360
    %v595 = vunpack.c.l.b16 %v361
    %v596 = vunpack.c.l.b16 %v362
    %v597 = vunpack.c.h.b16 %v362
    %v598 = vunpack.c.l.b16 %v363
    %v599 = vunpack.c.l.b16 %v364
    %v600 = vunpack.c.h.b16 %v364
    %v601 = vunpack.c.l.b16 %v365
    %v602 = vunpack.c.l.b16 %v366
    %v603 = vunpack.c.h.b16 %v366
    %v604 = vunpack.c.l.b16 %v367
    %v605 = vunpack.c.l.b16 %v368
    %v606 = vunpack.c.h.b16 %v368
    %v607 = vunpack.c.l.b16 %v369
    %v608 = vunpack.c.l.b16 %v370
    %v609 = vunpack.c.h.b16 %v370
    %v610 = vunpack.c.l.b16 %v371
    %v611 = vunpack.c.l.b16 %v372
    %v612 = vunpack.c.h.b16 %v372
    %v613 = vunpack.c.l.b16 %v373
    %v614 = vunpack.c.l.b16 %v374
    %v615 = vunpack.c.h.b16 %v374
    %v616 = vunpack.c.l.b16 %v375
    %v617 = vunpack.c.l.b16 %v376
    %v618 = vunpack.c.h.b16 %v376
    %v619 = vunpack.c.l.b16 %v377
    %v620 = vunpack.c.l.b16 %v378
    %v621 = vunpack.c.h.b16 %v378
    %v622 = vunpack.c.l.b16 %v379
    %v623 = vunpack.c.l.b16 %v380
    %v624 = vunpack.c.h.b16 %v380
    %v625 = vunpack.c.l.b16 %v381
    %v626 = vunpack.c.l.b16 %v382
    %v627 = vunpack.c.h.b16 %v382
    %v628 = vunpack.c.l.b16 %v383
    %v629 = vunpack.c.l.b16 %v384
    %v630 = vunpack.c.h.b16 %v384
    %v631 = vunpack.c.l.b16 %v385
    %v632 = vunpack.c.l.b16 %v386
    %v633 = vunpack.c.h.b16 %v386
    %v634 = vunpack.c.l.b16 %v387
    %v635 = vunpack.c.l.b16 %v388
    %v636 = vunpack.c.h.b16 %v388
    %v637 = vunpack.c.l.b16 %v389
    %v638 = vunpack.c.l.b16 %v390
    %v639 = vunpack.c.h.b16 %v390
    %v640 = vunpack.c.l.b16 %v391
    %v641 = vunpack.c.l.b16 %v392
    %v642 = vunpack.c.h.b16 %v392
    %v643 = vunpack.c.l.b16 %v393
    %v644 = vunpack.c.l.b16 %v394
    %v645 = vunpack.c.h.b16 %v394
    %v646 = vunpack.c.l.b16 %v395
    %v647 = vunpack.c.l.b16 %v396
    %v648 = vunpack.c.h.b16 %v396
    %v649 = vunpack.c.l.b16 %v397
    %v650 = vunpack.c.l.b16 %v398
    %v651 = vunpack.c.h.b16 %v398
    %v652 = vunpack.c.l.b16 %v399
    %v653 = vunpack.c.l.b16 %v400
    %v654 = vunpack.c.h.b16 %v400
    %v655 = vunpack.c.l.b16 %v401
    %v656 = vunpack.c.l.b16 %v402
    %v657 = vunpack.c.h.b16 %v402
    %v658 = vunpack.c.l.b16 %v403
    %v659 = vunpack.c.l.b16 %v404
    %v660 = vunpack.c.h.b16 %v404
    %v661 = vunpack.c.l.b16 %v405
    %v662 = vpack.c.b16 %v521, %v518
    %v663 = vpack.c.b16 %v522, %v519
    %v664 = vpack.c.b16 %v523, %v520
    %v665 = vpack.c.b16 %v527, %v524
    %v666 = vpack.c.b16 %v528, %v525
    %v667 = vpack.c.b16 %v529, %v526
    %v668 = vpack.c.b16 %v533, %v530
    %v669 = vpack.c.b16 %v534, %v531
    %v670 = vpack.c.b16 %v535, %v532
    %v671 = vpack.c.b16 %v539, %v536
    %v672 = vpack.c.b16 %v540, %v537
    %v673 = vpack.c.b16 %v541, %v538
    %v674 = vpack.c.b16 %v545, %v542
    %v675 = vpack.c.b16 %v546, %v543
    %v676 = vpack.c.b16 %v547, %v544
    %v677 = vpack.c.b16 %v551, %v548
    %v678 = vpack.c.b16 %v552, %v549
    %v679 = vpack.c.b16 %v553, %v550
    %v680 = vpack.c.b16 %v557, %v554
    %v681 = vpack.c.b16 %v558, %v555
    %v682 = vpack.c.b16 %v559, %v556
    %v683 = vpack.c.b16 %v563, %v560
    %v684 = vpack.c.b16 %v564, %v561
    %v685 = vpack.c.b16 %v565, %v562
    %v686 = vpack.c.b16 %v569, %v566
    %v687 = vpack.c.b16 %v570, %v567
    %v688 = vpack.c.b16 %v571, %v568
    %v689 = vpack.c.b16 %v575, %v572
    %v690 = vpack.c.b16 %v576, %v573
    %v691 = vpack.c.b16 %v577, %v574
    %v692 = vpack.c.b16 %v581, %v578
    %v693 = vpack.c.b16 %v582, %v579
    %v694 = vpack.c.b16 %v583, %v580
    %v695 = vpack.c.b16 %v587, %v584
    %v696 = vpack.c.b16 %v588, %v585
    %v697 = vpack.c.b16 %v589, %v586
    %v698 = vpack.c.b16 %v593, %v590
    %v699 = vpack.c.b16 %v594, %v591
    %v700 = vpack.c.b16 %v595, %v592
    %v701 = vpack.c.b16 %v599, %v596
    %v702 = vpack.c.b16 %v600, %v597
    %v703 = vpack.c.b16 %v601, %v598
    %v704 = vpack.c.b16 %v605, %v602
    %v705 = vpack.c.b16 %v606, %v603
    %v706 = vpack.c.b16 %v607, %v604
    %v707 = vpack.c.b16 %v611, %v608
    %v708 = vpack.c.b16 %v612, %v609
    %v709 = vpack.c.b16 %v613, %v610
    %v710 = vpack.c.b16 %v617, %v614
    %v711 = vpack.c.b16 %v618, %v615
    %v712 = vpack.c.b16 %v619, %v616
    %v713 = vpack.c.b16 %v623, %v620
    %v714 = vpack.c.b16 %v624, %v621
    %v715 = vpack.c.b16 %v625, %v622
    %v716 = vpack.c.b16 %v629, %v626
    %v717 = vpack.c.b16 %v630, %v627
    %v718 = vpack.c.b16 %v631, %v628
    %v719 = vpack.c.b16 %v635, %v632
    %v720 = vpack.c.b16 %v636, %v633
    %v721 = vpack.c.b16 %v637, %v634
    %v722 = vpack.c.b16 %v641, %v638
    %v723 = vpack.c.b16 %v642, %v639
    %v724 = vpack.c.b16 %v643, %v640
    %v725 = vpack.c.b16 %v647, %v644
    %v726 = vpack.c.b16 %v648, %v645
    %v727 = vpack.c.b16 %v649, %v646
    %v728 = vpack.c.b16 %v653, %v650
    %v729 = vpack.c.b16 %v654, %v651
    %v730 = vpack.c.b16 %v655, %v652
    %v731 = vpack.c.b16 %v659, %v656
    %v732 = vpack.c.b16 %v660, %v657
    %v733 = vpack.c.b16 %v661, %v658
    %806 = vmatprep.subr.bf16.mxu0 %v663
    %807 = vmatpush1.bf16.msra.mxu0 %v662
    %808 = vmatprep.subr.bf16.mxu0 %v666
    %809 = vmatpush1.bf16.msra.mxu0 %v665
    %810 = vmatprep.subr.bf16.mxu0 %v669
    %811 = vmatpush1.bf16.msra.mxu0 %v668
    %812 = vmatprep.subr.bf16.mxu0 %v672
    %813 = vmatpush1.bf16.msra.mxu0 %v671
    %814 = vmatprep.subr.bf16.mxu0 %v675
    %815 = vmatpush1.bf16.msra.mxu0 %v674
    %816 = vmatprep.subr.bf16.mxu0 %v678
    %817 = vmatpush1.bf16.msra.mxu0 %v677
    %818 = vmatprep.subr.bf16.mxu0 %v681
    %819 = vmatpush1.bf16.msra.mxu0 %v680
    %820 = vmatprep.subr.bf16.mxu0 %v684
    %821 = vmatpush1.bf16.msra.mxu0 %v683
    %822 = vmatprep.subr.bf16.mxu0 %v687
    %823 = vmatpush1.bf16.msra.mxu0 %v686
    %824 = vmatprep.subr.bf16.mxu0 %v690
    %825 = vmatpush1.bf16.msra.mxu0 %v689
    %826 = vmatprep.subr.bf16.mxu0 %v693
    %827 = vmatpush1.bf16.msra.mxu0 %v692
    %828 = vmatprep.subr.bf16.mxu0 %v696
    %829 = vmatpush1.bf16.msra.mxu0 %v695
    %830 = vmatprep.subr.bf16.mxu0 %v699
    %831 = vmatpush1.bf16.msra.mxu0 %v698
    %832 = vmatprep.subr.bf16.mxu0 %v702
    %833 = vmatpush1.bf16.msra.mxu0 %v701
    %834 = vmatprep.subr.bf16.mxu0 %v705
    %835 = vmatpush1.bf16.msra.mxu0 %v704
    %836 = vmatprep.subr.bf16.mxu0 %v708
    %837 = vmatpush1.bf16.msra.mxu0 %v707
    %838 = vmatprep.mubr.bf16.mxu0 %v308
    %839 = vmatmul.mubr.bf16.gmra.mrb[0].mxu0 %v307
    %v840 = vpop.f32.mrb[0].mxu0
    %v841 = vadd.f32 %v410, %v840
    %v842 = vpop.f32.mrb[0].mxu0
    %v843 = vadd.f32 %v414, %v842
    %v844 = vpop.f32.mrb[0].mxu0
    %v845 = vpop.f32.mrb[0].mxu0
    %846 = vdwg.mxu0
    %847 = vmatprep.subr.bf16.mxu0 %v711
    %848 = vmatpush1.bf16.msra.mxu0 %v710
    %849 = vmatprep.subr.bf16.mxu0 %v714
    %850 = vmatpush1.bf16.msra.mxu0 %v713
    %851 = vmatprep.subr.bf16.mxu0 %v717
    %852 = vmatpush1.bf16.msra.mxu0 %v716
    %853 = vmatprep.subr.bf16.mxu0 %v720
    %854 = vmatpush1.bf16.msra.mxu0 %v719
    %855 = vmatprep.subr.bf16.mxu0 %v723
    %856 = vmatpush1.bf16.msra.mxu0 %v722
    %857 = vmatprep.subr.bf16.mxu0 %v726
    %858 = vmatpush1.bf16.msra.mxu0 %v725
    %859 = vmatprep.subr.bf16.mxu0 %v729
    %860 = vmatpush1.bf16.msra.mxu0 %v728
    %861 = vmatprep.subr.bf16.mxu0 %v732
    %862 = vmatpush1.bf16.msra.mxu0 %v731
    %863 = vmatprep.subr.bf16.mxu0 0
    %864 = vmatpush1.bf16.msra.mxu0 0
    %865 = vmatprep.subr.bf16.mxu0 0
    %866 = vmatpush1.bf16.msra.mxu0 0
    %867 = vmatprep.subr.bf16.mxu0 0
    %868 = vmatpush1.bf16.msra.mxu0 0
    %869 = vmatprep.subr.bf16.mxu0 0
    %870 = vmatpush1.bf16.msra.mxu0 0
    %871 = vmatprep.subr.bf16.mxu0 0
    %872 = vmatpush1.bf16.msra.mxu0 0
    %873 = vmatprep.subr.bf16.mxu0 0
    %874 = vmatpush1.bf16.msra.mxu0 0
    %875 = vmatprep.subr.bf16.mxu0 0
    %876 = vmatpush1.bf16.msra.mxu0 0
    %877 = vmatprep.subr.bf16.mxu0 0
    %878 = vmatpush1.bf16.msra.mxu0 0
    %879 = vmatprep.mubr.bf16.mxu0 0
    %880 = vmatmul.mubr.bf16.gmra.mrb[0].mxu0 %v309
    %v881 = vpop.f32.mrb[0].mxu0
    %v882 = vadd.f32 %v841, %v881
    %v883 = vpop.f32.mrb[0].mxu0
    %v884 = vadd.f32 %v843, %v883
    %v885 = vpop.f32.mrb[0].mxu0
    %v886 = vpop.f32.mrb[0].mxu0
    %887 = vdwg.mxu0
    %888 = vmatprep.subr.bf16.mxu0 0
    %889 = vmatpush1.bf16.msra.mxu0 %v664
    %890 = vmatprep.subr.bf16.mxu0 0
    %891 = vmatpush1.bf16.msra.mxu0 %v667
    %892 = vmatprep.subr.bf16.mxu0 0
    %893 = vmatpush1.bf16.msra.mxu0 %v670
    %894 = vmatprep.subr.bf16.mxu0 0
    %895 = vmatpush1.bf16.msra.mxu0 %v673
    %896 = vmatprep.subr.bf16.mxu0 0
    %897 = vmatpush1.bf16.msra.mxu0 %v676
    %898 = vmatprep.subr.bf16.mxu0 0
    %899 = vmatpush1.bf16.msra.mxu0 %v679
    %900 = vmatprep.subr.bf16.mxu0 0
    %901 = vmatpush1.bf16.msra.mxu0 %v682
    %902 = vmatprep.subr.bf16.mxu0 0
    %903 = vmatpush1.bf16.msra.mxu0 %v685
    %904 = vmatprep.subr.bf16.mxu0 0
    %905 = vmatpush1.bf16.msra.mxu0 %v688
    %906 = vmatprep.subr.bf16.mxu0 0
    %907 = vmatpush1.bf16.msra.mxu0 %v691
    %908 = vmatprep.subr.bf16.mxu0 0
    %909 = vmatpush1.bf16.msra.mxu0 %v694
    %910 = vmatprep.subr.bf16.mxu0 0
    %911 = vmatpush1.bf16.msra.mxu0 %v697
    %912 = vmatprep.subr.bf16.mxu0 0
    %913 = vmatpush1.bf16.msra.mxu0 %v700
    %914 = vmatprep.subr.bf16.mxu0 0
    %915 = vmatpush1.bf16.msra.mxu0 %v703
    %916 = vmatprep.subr.bf16.mxu0 0
    %917 = vmatpush1.bf16.msra.mxu0 %v706
    %918 = vmatprep.subr.bf16.mxu0 0
    %919 = vmatpush1.bf16.msra.mxu0 %v709
    %920 = vmatprep.mubr.bf16.mxu0 %v308
    %921 = vmatmul.mubr.bf16.gmra.mrb[0].mxu0 %v307
    %v922 = vpop.f32.mrb[0].mxu0
    %v923 = vadd.f32 %v418, %v922
    %v924 = vpop.f32.mrb[0].mxu0
    %v925 = vpop.f32.mrb[0].mxu0
    %v926 = vpop.f32.mrb[0].mxu0
    %927 = vdwg.mxu0
    %928 = vmatprep.subr.bf16.mxu0 0
    %929 = vmatpush1.bf16.msra.mxu0 %v712
    %930 = vmatprep.subr.bf16.mxu0 0
    %931 = vmatpush1.bf16.msra.mxu0 %v715
    %932 = vmatprep.subr.bf16.mxu0 0
    %933 = vmatpush1.bf16.msra.mxu0 %v718
    %934 = vmatprep.subr.bf16.mxu0 0
    %935 = vmatpush1.bf16.msra.mxu0 %v721
    %936 = vmatprep.subr.bf16.mxu0 0
    %937 = vmatpush1.bf16.msra.mxu0 %v724
    %938 = vmatprep.subr.bf16.mxu0 0
    %939 = vmatpush1.bf16.msra.mxu0 %v727
    %940 = vmatprep.subr.bf16.mxu0 0
    %941 = vmatpush1.bf16.msra.mxu0 %v730
    %942 = vmatprep.subr.bf16.mxu0 0
    %943 = vmatpush1.bf16.msra.mxu0 %v733
    %944 = vmatprep.subr.bf16.mxu0 0
    %945 = vmatpush1.bf16.msra.mxu0 0
    %946 = vmatprep.subr.bf16.mxu0 0
    %947 = vmatpush1.bf16.msra.mxu0 0
    %948 = vmatprep.subr.bf16.mxu0 0
    %949 = vmatpush1.bf16.msra.mxu0 0
    %950 = vmatprep.subr.bf16.mxu0 0
    %951 = vmatpush1.bf16.msra.mxu0 0
    %952 = vmatprep.subr.bf16.mxu0 0
    %953 = vmatpush1.bf16.msra.mxu0 0
    %954 = vmatprep.subr.bf16.mxu0 0
    %955 = vmatpush1.bf16.msra.mxu0 0
    %956 = vmatprep.subr.bf16.mxu0 0
    %957 = vmatpush1.bf16.msra.mxu0 0
    %958 = vmatprep.subr.bf16.mxu0 0
    %959 = vmatpush1.bf16.msra.mxu0 0
    %960 = vmatprep.mubr.bf16.mxu0 0
    %961 = vmatmul.mubr.bf16.gmra.mrb[0].mxu0 %v309
    %v962 = vpop.f32.mrb[0].mxu0
    %v963 = vadd.f32 %v923, %v962
    %v964 = vpop.f32.mrb[0].mxu0
    %v965 = vpop.f32.mrb[0].mxu0
    %v966 = vpop.f32.mrb[0].mxu0
    %967 = vdwg.mxu0
    %v968 = vadd.f32 %v882, %v884
    %v969 = vadd.f32 %v968, %v963
    %970 = vadd.xlane.f32.xlu0 %v969
    %v971 = vpop.xlane.xlu0 %970
    %v972 = vmul.f32 %v971, 0.0033333334
    %v973 = vsub.f32 %v882, %v972
    %v974 = vsub.f32 %v884, %v972
    %v975 = vsub.f32 %v963, %v972
    %v976 = vmul.f32 %v973, %v973
    %v977 = vmul.f32 %v974, %v974
    %v978 = vmul.f32 %v975, %v975
    %v979 = vadd.f32 %v976, %v977
    %v980 = vadd.f32 %v979, %v978
    %981 = vadd.xlane.f32.xlu0 %v980
    %v982 = vpop.xlane.xlu0 %981
    %v983 = vmul.f32 %v972, %v972
    %v984 = vmul.f32 %v983, 84.0
    %v985 = vsub.f32 %v982, %v984
    %v986 = vmul.f32 %v985, 0.0033333334
    %v987 = vmax.f32 %v986, 0.0
    %v988 = vadd.f32 %v987, 1e-05
    %v989 = vrsqrt.pop %v988
    %v990 = vmul.f32 %v973, %v989
    %v991 = vmul.f32 %v974, %v989
    %v992 = vmul.f32 %v975, %v989
    %v994 = vlaneseq
    %v995 = vshrl.u32 %v994, 7
    %v996 = vsub.s32 0, %v995
    %v997 = vrot.slane %v94, %v996
    %v998 = vlaneseq
    %v999 = vshrl.u32 %v998, 7
    %v1000 = vsub.s32 1, %v999
    %v1001 = vrot.slane %v94, %v1000
    %v1002 = vlaneseq
    %v1003 = vshrl.u32 %v1002, 7
    %v1004 = vsub.s32 2, %v1003
    %v1005 = vrot.slane %v94, %v1004
    %v1009 = vmul.f32 %v990, %v997
    %v1010 = vmul.f32 %v991, %v1001
    %v1011 = vmul.f32 %v992, %v1005
    %v1013 = vlaneseq
    %v1014 = vshrl.u32 %v1013, 7
    %v1015 = vsub.s32 0, %v1014
    %v1016 = vrot.slane %v96, %v1015
    %v1017 = vlaneseq
    %v1018 = vshrl.u32 %v1017, 7
    %v1019 = vsub.s32 1, %v1018
    %v1020 = vrot.slane %v96, %v1019
    %v1021 = vlaneseq
    %v1022 = vshrl.u32 %v1021, 7
    %v1023 = vsub.s32 2, %v1022
    %v1024 = vrot.slane %v96, %v1023
    %v1028 = vadd.f32 %v1009, %v1016
    %v1029 = vadd.f32 %v1010, %v1020
    %v1030 = vadd.f32 %v1011, %v1024
    %v1031 = vmax.f32 %v1028, 0.0
    %v1032 = vmax.f32 %v1029, 0.0
    %v1033 = vmax.f32 %v1030, 0.0
    %v1034 = vpack.c.bf16 %v1031, %v1031
    %v1035 = vpack.c.bf16 %v1032, %v1032
    %v1036 = vpack.c.bf16 %v1033, %v1033
    %v1037 = vld [vmem:[#allocation8] sm:$0xf]
    %v1038 = vld [vmem:[#allocation8 + $0x4] sm:$0xf]
    %v1039 = vld [vmem:[#allocation8 + $0x8] sm:$0xf]
    %v1040 = vld [vmem:[#allocation8 + $0xc] sm:$0xf]
    %v1041 = vld [vmem:[#allocation8 + $0x10] sm:$0xf]
    %v1042 = vld [vmem:[#allocation8 + $0x14] sm:$0xf]
    %v1043 = vld [vmem:[#allocation8 + $0x18] sm:$0xf]
    %v1044 = vld [vmem:[#allocation8 + $0x1c] sm:$0xf]
    %v1045 = vld [vmem:[#allocation8 + $0x20] sm:$0xf]
    %v1046 = vld [vmem:[#allocation8 + $0x24] sm:$0xf]
    %v1047 = vld [vmem:[#allocation8 + $0x28] sm:$0xf]
    %v1048 = vld [vmem:[#allocation8 + $0x2c] sm:$0xf]
    %v1049 = vld [vmem:[#allocation8 + $0x30] sm:$0xf]
    %v1050 = vld [vmem:[#allocation8 + $0x34] sm:$0xf]
    %v1051 = vld [vmem:[#allocation8 + $0x38] sm:$0xf]
    %v1052 = vld [vmem:[#allocation8 + $0x3c] sm:$0xf]
    %v1053 = vld [vmem:[#allocation8 + $0x40] sm:$0xf]
    %v1054 = vld [vmem:[#allocation8 + $0x44] sm:$0xf]
    %v1055 = vld [vmem:[#allocation8 + $0x48] sm:$0xf]
    %v1056 = vld [vmem:[#allocation8 + $0x4c] sm:$0xf]
    %v1057 = vld [vmem:[#allocation8 + $0x50] sm:$0xf]
    %v1058 = vld [vmem:[#allocation8 + $0x54] sm:$0xf]
    %v1059 = vld [vmem:[#allocation8 + $0x58] sm:$0xf]
    %v1060 = vld [vmem:[#allocation8 + $0x5c] sm:$0xf]
    %v1061 = vld [vmem:[#allocation8 + $0x60] sm:$0xf]
    %v1062 = vld [vmem:[#allocation8 + $0x64] sm:$0xf]
    %v1063 = vld [vmem:[#allocation8 + $0x68] sm:$0xf]
    %v1064 = vld [vmem:[#allocation8 + $0x6c] sm:$0xf]
    %v1065 = vld [vmem:[#allocation8 + $0x70] sm:$0xf]
    %v1066 = vld [vmem:[#allocation8 + $0x74] sm:$0xf]
    %v1067 = vld [vmem:[#allocation8 + $0x78] sm:$0xf]
    %v1068 = vld [vmem:[#allocation8 + $0x7c] sm:$0xf]
    %v1069 = vld [vmem:[#allocation8 + $0x80] sm:$0xf]
    %v1070 = vld [vmem:[#allocation8 + $0x84] sm:$0xf]
    %v1071 = vld [vmem:[#allocation8 + $0x88] sm:$0xf]
    %v1072 = vld [vmem:[#allocation8 + $0x8c] sm:$0xf]
    %v1073 = vld [vmem:[#allocation8 + $0x90] sm:$0xf]
    %v1074 = vld [vmem:[#allocation8 + $0x94] sm:$0xf]
    %v1075 = vld [vmem:[#allocation8 + $0x98] sm:$0xf]
    %v1076 = vld [vmem:[#allocation8 + $0x9c] sm:$0xf]
    %v1077 = vld [vmem:[#allocation8 + $0xa0] sm:$0xf]
    %v1078 = vld [vmem:[#allocation8 + $0xa4] sm:$0xf]
    %v1079 = vld [vmem:[#allocation8 + $0xa8] sm:$0xf]
    %v1080 = vld [vmem:[#allocation8 + $0xac] sm:$0xf]
    %v1081 = vld [vmem:[#allocation8 + $0xb0] sm:$0xf]
    %v1082 = vld [vmem:[#allocation8 + $0xb4] sm:$0xf]
    %v1083 = vld [vmem:[#allocation8 + $0xb8] sm:$0xf]
    %v1084 = vld [vmem:[#allocation8 + $0xbc] sm:$0xf]
    %v1133 = vunpack.c.l.b16 %v1037
    %v1134 = vunpack.c.l.b16 %v1038
    %v1135 = vunpack.c.l.b16 %v1039
    %v1136 = vunpack.c.l.b16 %v1040
    %v1137 = vunpack.c.l.b16 %v1041
    %v1138 = vunpack.c.l.b16 %v1042
    %v1139 = vunpack.c.l.b16 %v1043
    %v1140 = vunpack.c.l.b16 %v1044
    %v1141 = vunpack.c.l.b16 %v1045
    %v1142 = vunpack.c.l.b16 %v1046
    %v1143 = vunpack.c.l.b16 %v1047
    %v1144 = vunpack.c.l.b16 %v1048
    %v1145 = vunpack.c.l.b16 %v1049
    %v1146 = vunpack.c.l.b16 %v1050
    %v1147 = vunpack.c.l.b16 %v1051
    %v1148 = vunpack.c.l.b16 %v1052
    %v1149 = vunpack.c.l.b16 %v1053
    %v1150 = vunpack.c.l.b16 %v1054
    %v1151 = vunpack.c.l.b16 %v1055
    %v1152 = vunpack.c.l.b16 %v1056
    %v1153 = vunpack.c.l.b16 %v1057
    %v1154 = vunpack.c.l.b16 %v1058
    %v1155 = vunpack.c.l.b16 %v1059
    %v1156 = vunpack.c.l.b16 %v1060
    %v1157 = vunpack.c.l.b16 %v1061
    %v1158 = vunpack.c.l.b16 %v1062
    %v1159 = vunpack.c.l.b16 %v1063
    %v1160 = vunpack.c.l.b16 %v1064
    %v1161 = vunpack.c.l.b16 %v1065
    %v1162 = vunpack.c.l.b16 %v1066
    %v1163 = vunpack.c.l.b16 %v1067
    %v1164 = vunpack.c.l.b16 %v1068
    %v1165 = vunpack.c.l.b16 %v1069
    %v1166 = vunpack.c.l.b16 %v1070
    %v1167 = vunpack.c.l.b16 %v1071
    %v1168 = vunpack.c.l.b16 %v1072
    %v1169 = vunpack.c.l.b16 %v1073
    %v1170 = vunpack.c.l.b16 %v1074
    %v1171 = vunpack.c.l.b16 %v1075
    %v1172 = vunpack.c.l.b16 %v1076
    %v1173 = vunpack.c.l.b16 %v1077
    %v1174 = vunpack.c.l.b16 %v1078
    %v1175 = vunpack.c.l.b16 %v1079
    %v1176 = vunpack.c.l.b16 %v1080
    %v1177 = vunpack.c.l.b16 %v1081
    %v1178 = vunpack.c.l.b16 %v1082
    %v1179 = vunpack.c.l.b16 %v1083
    %v1180 = vunpack.c.l.b16 %v1084
    %v1181 = vpack.c.b16 %v1134, %v1133
    %v1182 = vpack.c.b16 %v1136, %v1135
    %v1183 = vpack.c.b16 %v1138, %v1137
    %v1184 = vpack.c.b16 %v1140, %v1139
    %v1185 = vpack.c.b16 %v1142, %v1141
    %v1186 = vpack.c.b16 %v1144, %v1143
    %v1187 = vpack.c.b16 %v1146, %v1145
    %v1188 = vpack.c.b16 %v1148, %v1147
    %v1189 = vpack.c.b16 %v1150, %v1149
    %v1190 = vpack.c.b16 %v1152, %v1151
    %v1191 = vpack.c.b16 %v1154, %v1153
    %v1192 = vpack.c.b16 %v1156, %v1155
    %v1193 = vpack.c.b16 %v1158, %v1157
    %v1194 = vpack.c.b16 %v1160, %v1159
    %v1195 = vpack.c.b16 %v1162, %v1161
    %v1196 = vpack.c.b16 %v1164, %v1163
    %v1197 = vpack.c.b16 %v1166, %v1165
    %v1198 = vpack.c.b16 %v1168, %v1167
    %v1199 = vpack.c.b16 %v1170, %v1169
    %v1200 = vpack.c.b16 %v1172, %v1171
    %v1201 = vpack.c.b16 %v1174, %v1173
    %v1202 = vpack.c.b16 %v1176, %v1175
    %v1203 = vpack.c.b16 %v1178, %v1177
    %v1204 = vpack.c.b16 %v1180, %v1179
    %1229 = vmatprep.subr.bf16.mxu0 0
    %1230 = vmatpush1.bf16.msra.mxu0 %v1181
    %1231 = vmatprep.subr.bf16.mxu0 0
    %1232 = vmatpush1.bf16.msra.mxu0 %v1182
    %1233 = vmatprep.subr.bf16.mxu0 0
    %1234 = vmatpush1.bf16.msra.mxu0 %v1183
    %1235 = vmatprep.subr.bf16.mxu0 0
    %1236 = vmatpush1.bf16.msra.mxu0 %v1184
    %1237 = vmatprep.subr.bf16.mxu0 0
    %1238 = vmatpush1.bf16.msra.mxu0 %v1185
    %1239 = vmatprep.subr.bf16.mxu0 0
    %1240 = vmatpush1.bf16.msra.mxu0 %v1186
    %1241 = vmatprep.subr.bf16.mxu0 0
    %1242 = vmatpush1.bf16.msra.mxu0 %v1187
    %1243 = vmatprep.subr.bf16.mxu0 0
    %1244 = vmatpush1.bf16.msra.mxu0 %v1188
    %1245 = vmatprep.subr.bf16.mxu0 0
    %1246 = vmatpush1.bf16.msra.mxu0 %v1189
    %1247 = vmatprep.subr.bf16.mxu0 0
    %1248 = vmatpush1.bf16.msra.mxu0 %v1190
    %1249 = vmatprep.subr.bf16.mxu0 0
    %1250 = vmatpush1.bf16.msra.mxu0 %v1191
    %1251 = vmatprep.subr.bf16.mxu0 0
    %1252 = vmatpush1.bf16.msra.mxu0 %v1192
    %1253 = vmatprep.subr.bf16.mxu0 0
    %1254 = vmatpush1.bf16.msra.mxu0 %v1193
    %1255 = vmatprep.subr.bf16.mxu0 0
    %1256 = vmatpush1.bf16.msra.mxu0 %v1194
    %1257 = vmatprep.subr.bf16.mxu0 0
    %1258 = vmatpush1.bf16.msra.mxu0 %v1195
    %1259 = vmatprep.subr.bf16.mxu0 0
    %1260 = vmatpush1.bf16.msra.mxu0 %v1196
    %1261 = vmatprep.mubr.bf16.mxu0 %v1035
    %1262 = vmatmul.mubr.bf16.gmra.mrb[0].mxu0 %v1034
    %v1263 = vpop.f32.mrb[0].mxu0
    %v1264 = vadd.f32 %v97, %v1263
    %v1265 = vpop.f32.mrb[0].mxu0
    %v1266 = vpop.f32.mrb[0].mxu0
    %v1267 = vpop.f32.mrb[0].mxu0
    %1268 = vdwg.mxu0
    %1269 = vmatprep.subr.bf16.mxu0 0
    %1270 = vmatpush1.bf16.msra.mxu0 %v1197
    %1271 = vmatprep.subr.bf16.mxu0 0
    %1272 = vmatpush1.bf16.msra.mxu0 %v1198
    %1273 = vmatprep.subr.bf16.mxu0 0
    %1274 = vmatpush1.bf16.msra.mxu0 %v1199
    %1275 = vmatprep.subr.bf16.mxu0 0
    %1276 = vmatpush1.bf16.msra.mxu0 %v1200
    %1277 = vmatprep.subr.bf16.mxu0 0
    %1278 = vmatpush1.bf16.msra.mxu0 %v1201
    %1279 = vmatprep.subr.bf16.mxu0 0
    %1280 = vmatpush1.bf16.msra.mxu0 %v1202
    %1281 = vmatprep.subr.bf16.mxu0 0
    %1282 = vmatpush1.bf16.msra.mxu0 %v1203
    %1283 = vmatprep.subr.bf16.mxu0 0
    %1284 = vmatpush1.bf16.msra.mxu0 %v1204
    %1285 = vmatprep.subr.bf16.mxu0 0
    %1286 = vmatpush1.bf16.msra.mxu0 0
    %1287 = vmatprep.subr.bf16.mxu0 0
    %1288 = vmatpush1.bf16.msra.mxu0 0
    %1289 = vmatprep.subr.bf16.mxu0 0
    %1290 = vmatpush1.bf16.msra.mxu0 0
    %1291 = vmatprep.subr.bf16.mxu0 0
    %1292 = vmatpush1.bf16.msra.mxu0 0
    %1293 = vmatprep.subr.bf16.mxu0 0
    %1294 = vmatpush1.bf16.msra.mxu0 0
    %1295 = vmatprep.subr.bf16.mxu0 0
    %1296 = vmatpush1.bf16.msra.mxu0 0
    %1297 = vmatprep.subr.bf16.mxu0 0
    %1298 = vmatpush1.bf16.msra.mxu0 0
    %1299 = vmatprep.subr.bf16.mxu0 0
    %1300 = vmatpush1.bf16.msra.mxu0 0
    %1301 = vmatprep.mubr.bf16.mxu0 0
    %1302 = vmatmul.mubr.bf16.gmra.mrb[0].mxu0 %v1036
    %v1303 = vpop.f32.mrb[0].mxu0
    %v1304 = vadd.f32 %v1264, %v1303
    %v1305 = vpop.f32.mrb[0].mxu0
    %v1306 = vpop.f32.mrb[0].mxu0
    %v1307 = vpop.f32.mrb[0].mxu0
    %1308 = vdwg.mxu0
    %1309 = vst [vmem:[#allocation11] sm:$0xff] %v1304
    // Predicated region
    $region42: #{tpu_custom_call.1} parent=1 // pred_check
      _
    $region43: #{tpu_custom_call.1} parent=1 // pred_check_branch
      %1311 = sbr.rel (0) target = $region45
    $region44: #{tpu_custom_call.1} parent=1 // pred_region
      %s1313 = ssub.s32 128, 128
      %1314 = vsyncadd [#allocation4], %s1313
      %s1316 = sshll.u32 [#allocation11], 4
      %s1317 = int_to_ptr.vmem [resolvable:$true] %s1316
      %1319 = dma.vmem_to_hbm [thread:$0]  %s1317, 128, %s5, [#allocation4]
    $region45: #{tpu_custom_call.1} parent=1 // pred_fallthru
      _
    // Predicated region
    $region46: #{tpu_custom_call.1} parent=1 // pred_check
      _
    $region47: #{tpu_custom_call.1} parent=1 // pred_check_branch
      %1321 = sbr.rel (0) target = $region49
    $region48: #{tpu_custom_call.1} parent=1 // pred_region
      %1322 = dma.done [#allocation4], 128
    $region49: #{tpu_custom_call.1} parent=1 // pred_fallthru
      _
    %1323 = vsyncpa [#allocation3], 1
    %1324 = vsyncpa [#allocation6], 1
    %1325 = vsyncpa [#allocation9], 1
    %1326 = vsyncpa [#allocation4], 1

</llo_original>
